<compile_context>
chip_gen: v6e
topology: v6e:2x2x1
jax: 0.10.0
libtpu: 0.0.40
codegen_flags: <defaults>
</compile_context>

<pallas_src>
import copy
import functools
import math

import jax
import jax.numpy as jnp
import numpy as np
from jax import lax
from jax.experimental import pallas as pl
from jax.experimental.pallas import tpu as pltpu


# ---------------------------------------------------------------------------
# Cell-anchor construction (== RotatedAnchorGenerator.generate_cell_anchors).
# A handful of floats computed once at init -> plain NumPy.
# ---------------------------------------------------------------------------
def generate_cell_anchors(sizes, aspect_ratios, angles):
    anchors = []
    for size in sizes:
        area = float(size) ** 2.0
        for ar in aspect_ratios:
            w = math.sqrt(area / ar)
            h = ar * w
            for a in angles:
                anchors.append([0.0, 0.0, w, h, float(a)])
    return np.asarray(anchors, dtype=np.float32)  # (A, 5)


# ---------------------------------------------------------------------------
# Pallas kernel.
#   out[y, col] = const_row[col] + y_mask[col] * (y + offset) * stride
# const_row / y_mask are host-precomputed (1, W*A*5) tables that already fold
# in the base anchors, the period-5 column pattern and the x-center shifts.
# ---------------------------------------------------------------------------
def _anchor_kernel(const_ref, ymask_ref, out_ref, *, stride, offset):
    i = pl.program_id(0)
    bh = out_ref.shape[0]
    # Row index of each sublane within the full (H, W*A*5) slab.
    row = lax.broadcasted_iota(jnp.int32, (bh, 1), 0) + i * bh
    shift_y = (row.astype(jnp.float32) + jnp.float32(offset)) * jnp.float32(stride)
    out_ref[...] = const_ref[...] + ymask_ref[...] * shift_y


# ---------------------------------------------------------------------------
# Tiling / table helpers.
# ---------------------------------------------------------------------------
_PALLAS_MIN_BYTES = 32 * 1024      # below this, plain jnp beats a kernel launch
_VMEM_TILE_CAP = 8 << 20           # per output buffer (x2 double-buffered)
_TILE_MIN_BYTES = 512 << 10        # amortize ~0.35us per-grid-step overhead


def _round_up(x, m):
    return ((x + m - 1) // m) * m


def _choose_block_h(H, WC):
    """Largest row-tile that respects the VMEM budget, with >= ~4 grid steps
    for large levels (v7x megacore) and >= ~512 KiB tiles (per-step overhead)."""
    row_bytes = _round_up(WC, 128) * 4          # lane-padded VMEM row
    h8 = _round_up(H, 8)
    vmem_rows = max(8, (_VMEM_TILE_CAP // row_bytes) // 8 * 8)
    quarter = _round_up(max(1, -(-H // 4)), 8)                       # ~4 steps
    floor_rows = _round_up(max(1, -(-_TILE_MIN_BYTES // row_bytes)), 8)
    block_h = max(quarter, min(floor_rows, h8))
    block_h = min(block_h, vmem_rows, h8)
    return block_h


def _build_level_tables(base, W, stride, offset):
    """Host-precomputed (1, W*A*5) tables folding base anchors + x shifts."""
    A = base.shape[0]
    C = A * 5
    col = np.arange(W * C)
    x = (col // C).astype(np.float32)            # grid x of this column
    a = (col % C) // 5                           # anchor index
    c = col % 5                                  # (x_ctr, y_ctr, w, h, angle)
    base_pat = base[a, c]
    mask_x = (c == 0).astype(np.float32)
    mask_y = (c == 1).astype(np.float32)
    const_row = base_pat + mask_x * (x + np.float32(offset)) * np.float32(stride)
    return (const_row.astype(np.float32).reshape(1, W * C),
            mask_y.reshape(1, W * C))


@functools.lru_cache(maxsize=None)
def _build_level_fn(base_key, A, H, W, stride, offset):
    base = np.asarray(base_key, dtype=np.float32).reshape(A, 5)
    WC = W * A * 5
    const_np, ymask_np = _build_level_tables(base, W, stride, offset)
    const_row = jnp.asarray(const_np)
    y_mask = jnp.asarray(ymask_np)

    block_h = _choose_block_h(H, WC)
    grid_h = pl.cdiv(H, block_h)

    kernel = functools.partial(_anchor_kernel, stride=float(stride),
                               offset=float(offset))
    call = pl.pallas_call(
        kernel,
        out_shape=jax.ShapeDtypeStruct((H, WC), jnp.float32),
        grid_spec=pltpu.PrefetchScalarGridSpec(
            num_scalar_prefetch=0,
            grid=(grid_h,),
            in_specs=[pl.BlockSpec((1, WC), lambda i: (0, 0)),
                      pl.BlockSpec((1, WC), lambda i: (0, 0))],
            out_specs=pl.BlockSpec((block_h, WC), lambda i: (i, 0)),
        ),
        compiler_params=pltpu.CompilerParams(
            dimension_semantics=("parallel",),
            vmem_limit_bytes=32 * 1024 * 1024),
    )

    def fn():
        out = call(const_row, y_mask)             # (H, W*A*5), lane-dense
        return out.reshape(H * W * A, 5)          # metadata-only reshape
    return fn


def _grid_anchors_jnp(base, H, W, stride, offset):
    """Plain-JAX fallback for tiny levels (kernel launch overhead dominates)."""
    sx = (jnp.arange(W, dtype=jnp.float32) + offset) * stride
    sy = (jnp.arange(H, dtype=jnp.float32) + offset) * stride
    shift_y, shift_x = jnp.meshgrid(sy, sx, indexing="ij")
    z = jnp.zeros((H * W,), jnp.float32)
    shifts = jnp.stack([shift_x.reshape(-1), shift_y.reshape(-1), z, z, z], axis=1)
    return (shifts.reshape(-1, 1, 5) +
            jnp.asarray(base, jnp.float32).reshape(1, -1, 5)).reshape(-1, 5)


def grid_anchors_level(base_anchors, grid_size, stride, offset):
    """Anchors for one feature level. Returns (H*W*A, 5) float32."""
    H, W = int(grid_size[0]), int(grid_size[1])
    base = np.asarray(base_anchors, dtype=np.float32)
    A = base.shape[0]
    if H * W * A * 5 * 4 < _PALLAS_MIN_BYTES:
        return _grid_anchors_jnp(base, H, W, float(stride), float(offset))
    fn = _build_level_fn(tuple(map(float, base.reshape(-1))),
                         A, H, W, float(stride), float(offset))
    return fn()


# ---------------------------------------------------------------------------
# Module-equivalent wrapper
# ---------------------------------------------------------------------------
class RotatedAnchorGeneratorPallas:
    def __init__(self, sizes, aspect_ratios, angles, strides, offset):
        self.strides = list(strides)
        self.offset = float(offset)
        assert 0.0 <= self.offset < 1.0, self.offset
        self.num_features = len(self.strides)

        if len(sizes) == 1:
            sizes = sizes * self.num_features
        if len(aspect_ratios) == 1:
            aspect_ratios = aspect_ratios * self.num_features
        if len(angles) == 1:
            angles = angles * self.num_features
        assert self.num_features == len(sizes) == len(aspect_ratios) == len(angles)

        self.cell_anchors = [
            generate_cell_anchors(s, ar, an)
            for s, ar, an in zip(sizes, aspect_ratios, angles)
        ]

    @property
    def box_dim(self):
        return 5

    @property
    def num_cell_anchors(self):
        return [ca.shape[0] for ca in self.cell_anchors]

    def grid_anchors(self, grid_sizes):
        anchors = []
        for size, stride, base in zip(grid_sizes, self.strides, self.cell_anchors):
            anchors.append(grid_anchors_level(base, size, stride, self.offset))
        return anchors

    def forward(self, features):
        # features: list of NCHW arrays, one per feature level.
        num_images = features[0].shape[0]
        grid_sizes = [f.shape[-2:] for f in features]
        anchors_over_all_feature_maps = self.grid_anchors(grid_sizes)
        # TODO(synk): RotatedBoxes wrapper class is plain metadata; raw (N, 5)
        # arrays are returned instead.
        anchors_in_image = list(anchors_over_all_feature_maps)
        return [copy.copy(anchors_in_image) for _ in range(num_images)]

    __call__ = forward


# ---------------------------------------------------------------------------
# Reference (pure NumPy) for verification — mirrors the PyTorch code exactly.
# ---------------------------------------------------------------------------
def _ref_grid_anchors(base, grid_size, stride, offset):
    H, W = grid_size
    shifts_x = np.arange(offset * stride, W * stride, step=stride, dtype=np.float32)
    shifts_y = np.arange(offset * stride, H * stride, step=stride, dtype=np.float32)
    shift_y, shift_x = np.meshgrid(shifts_y, shifts_x, indexing="ij")
    shift_x = shift_x.reshape(-1)
    shift_y = shift_y.reshape(-1)
    zeros = np.zeros_like(shift_x)
    shifts = np.stack((shift_x, shift_y, zeros, zeros, zeros), axis=1)
    return (shifts.reshape(-1, 1, 5) + base.reshape(1, -1, 5)).reshape(-1, 5)


if __name__ == "__main__":
    key = jax.random.PRNGKey(0)
    k0, k1, k2 = jax.random.split(key, 3)

    # Three FPN-like levels, NCHW.  Levels 0/1 go through the Pallas kernel;
    # level 2 is small enough to take the pure-jnp fallback path.
    feat0 = jax.random.normal(k0, (2, 4, 32, 48), dtype=jnp.float32)
    feat1 = jax.random.normal(k1, (2, 4, 16, 24), dtype=jnp.float32)
    feat2 = jax.random.normal(k2, (2, 4, 8, 12), dtype=jnp.float32)
    features = [feat0, feat1, feat2]

    gen = RotatedAnchorGeneratorPallas(
        sizes=[[32, 64]],
        aspect_ratios=[[0.5, 1.0]],
        angles=[[-90.0, 0.0, 90.0]],
        strides=[4, 8, 16],
        offset=0.5,
    )

    anchors = gen(features)
    jax.block_until_ready(jax.tree_util.tree_leaves(anchors))

    ok = True
    # Verify every level against the NumPy reference of the PyTorch semantics.
    for lvl, (feat, stride, base) in enumerate(zip(features, gen.strides, gen.cell_anchors)):
        H, W = feat.shape[-2:]
        ref = _ref_grid_anchors(base, (H, W), stride, gen.offset)
        got = np.asarray(anchors[0][lvl])
        assert got.shape == ref.shape, (got.shape, ref.shape)
        ok &= np.allclose(got, ref, atol=1e-4, rtol=1e-5)
    # Same anchors for every image.
    ok &= np.allclose(np.asarray(anchors[0][0]), np.asarray(anchors[1][0]))

    # Extra check: a bigger level that exercises the multi-step grid with a
    # ragged last row-tile through the Pallas path.
    big_H, big_W, big_stride = 112, 96, 4
    got_big = np.asarray(grid_anchors_level(gen.cell_anchors[0],
                                            (big_H, big_W), big_stride, gen.offset))
    ref_big = _ref_grid_anchors(gen.cell_anchors[0], (big_H, big_W),
                                big_stride, gen.offset)
    assert got_big.shape == ref_big.shape, (got_big.shape, ref_big.shape)
    ok &= np.allclose(got_big, ref_big, atol=1e-4, rtol=1e-5)

    assert ok, "mismatch vs reference"
    print("KERNEL_OK")
</pallas_src>

<mosaic_0001>
module attributes {stable_mosaic.version = 11 : i64} {
  func.func @_anchor_kernel(%arg0: i32, %arg1: memref<1x2880xf32, #tpu.memory_space<vmem>>, %arg2: memref<1x2880xf32, #tpu.memory_space<vmem>>, %arg3: memref<32x2880xf32, #tpu.memory_space<vmem>>) attributes {dimension_semantics = [#tpu.dimension_semantics<parallel>], iteration_bounds = array<i64: 1>, scalar_prefetch = 0 : i64, scratch_operands = 0 : i64, tpu.core_type = #tpu.core_type<tc>, window_params = [{pipeline_mode = #tpu.pipeline_mode<synchronous>, transform_indices = @transform_0, window_bounds = array<i64: 1, 2880>}, {pipeline_mode = #tpu.pipeline_mode<synchronous>, transform_indices = @transform_1, window_bounds = array<i64: 1, 2880>}, {transform_indices = @transform_2, window_bounds = array<i64: 32, 2880>}]} {
    %0 = tpu.iota {dimensions = array<i32: 0>} : vector<32x1xi32>
    %c32_i32 = arith.constant 32 : i32
    %1 = arith.muli %arg0, %c32_i32 : i32
    %2 = vector.broadcast %1 : i32 to vector<32x1xi32>
    %3 = arith.addi %0, %2 : vector<32x1xi32>
    %4 = arith.sitofp %3 : vector<32x1xi32> to vector<32x1xf32>
    %cst = arith.constant 5.000000e-01 : f32
    %5 = vector.broadcast %cst : f32 to vector<32x1xf32>
    %6 = arith.addf %4, %5 : vector<32x1xf32>
    %cst_0 = arith.constant 4.000000e+00 : f32
    %7 = vector.broadcast %cst_0 : f32 to vector<32x1xf32>
    %8 = arith.mulf %6, %7 : vector<32x1xf32>
    %c0 = arith.constant 0 : index
    %c0_1 = arith.constant 0 : index
    %9 = vector.load %arg1[%c0, %c0_1] : memref<1x2880xf32, #tpu.memory_space<vmem>>, vector<1x2880xf32>
    %c0_2 = arith.constant 0 : index
    %c0_3 = arith.constant 0 : index
    %10 = vector.load %arg2[%c0_2, %c0_3] : memref<1x2880xf32, #tpu.memory_space<vmem>>, vector<1x2880xf32>
    %11 = vector.broadcast %10 : vector<1x2880xf32> to vector<32x2880xf32>
    %12 = vector.broadcast %8 : vector<32x1xf32> to vector<32x2880xf32>
    %13 = arith.mulf %11, %12 : vector<32x2880xf32>
    %14 = vector.broadcast %9 : vector<1x2880xf32> to vector<32x2880xf32>
    %15 = arith.addf %14, %13 : vector<32x2880xf32>
    %c0_4 = arith.constant 0 : index
    %c0_5 = arith.constant 0 : index
    %16 = vector.load %arg3[%c0_4, %c0_5] : memref<32x2880xf32, #tpu.memory_space<vmem>>, vector<32x2880xf32>
    tpu.vector_store %arg3[%c0_4, %c0_5], %15 {strides = array<i32>} : memref<32x2880xf32, #tpu.memory_space<vmem>>, vector<32x2880xf32>,
    return
  }
  func.func @transform_0(%arg0: i32) -> (i32, i32) {
    %c0_i32 = arith.constant 0 : i32
    %c0_i32_0 = arith.constant 0 : i32
    %c0_i32_1 = arith.constant 0 : i32
    return %c0_i32, %c0_i32_0 : i32, i32
  }
  func.func @transform_1(%arg0: i32) -> (i32, i32) {
    %c0_i32 = arith.constant 0 : i32
    %c0_i32_0 = arith.constant 0 : i32
    %c0_i32_1 = arith.constant 0 : i32
    return %c0_i32, %c0_i32_0 : i32, i32
  }
  func.func @transform_2(%arg0: i32) -> (i32, i32) {
    %c0_i32 = arith.constant 0 : i32
    %c0_i32_0 = arith.constant 0 : i32
    return %arg0, %c0_i32 : i32, i32
  }
}

</mosaic_0001>

<llo_original>
// kernel: tpu_custom_call.1
$region0: #{tpu_custom_call.1}
  #allocation0 [shape = 'u32[]', space=smem, size = 0x4, offset = 0x4, fixed_abs, tag = 'smem constant byte address 0x4 - core index']
  #allocation1 [shape = 'u32[144,128]{1,0:T(1,128)}', space=vmem, size = 0x12000, scoped, tag = 'internal scratch']
  %s0 = inlined_call_operand.hbm [shape: f32[1,2880], index: 0, kind: input, shape index: {}]
  %s1 = inlined_call_operand.hbm [shape: f32[1,2880], index: 1, kind: input, shape index: {}]
  %s2 = inlined_call_operand.hbm [shape: f32[32,2880], index: 2, kind: output, shape index: {}]
  %s3 = sld [smem:[#allocation0]]
  $region26: #{tpu_custom_call.1} parent=0
    _
  %s5 = ssub.s32 1, %s3
  %s6 = scalar_select 0, %s5, %s3
  $region1: #{tpu_custom_call.1} parent=0
    #allocation2 [shape = 'u8[11776]{0}', space=vmem, size = 0x3000, scoped, tag = 'input window, operand 0, single buffered']
    #allocation3 [shape = 's32[1]{0}', space=sflag, size = 0x4, scoped, tag = 'scoped memory for tpu_custom_call.1']
    #allocation4 [shape = 's32[1]{0}', space=sflag, size = 0x4, scoped, tag = 'scoped memory for tpu_custom_call.1']
    #allocation5 [shape = 'u8[11776]{0}', space=vmem, size = 0x3000, scoped, tag = 'input window, operand 1, single buffered']
    #allocation6 [shape = 's32[1]{0}', space=sflag, size = 0x4, scoped, tag = 'scoped memory for tpu_custom_call.1']
    #allocation7 [shape = 'u8[376832]{0}', space=vmem, size = 0x5c000, scoped, tag = 'output window, operand 0, single buffered']
    %7 = vsyncpa [#allocation3], 0
    %8 = vsyncpa [#allocation6], 0
    %9 = vsyncpa [#allocation4], 0
    // Predicated region
    $region2: #{tpu_custom_call.1} parent=1 // pred_check
      _
    $region3: #{tpu_custom_call.1} parent=1 // pred_check_branch
      %11 = sbr.rel (0) target = $region5
    $region4: #{tpu_custom_call.1} parent=1 // pred_region
      %s13 = ssub.s32 368, 368
      %14 = vsyncadd [#allocation3], %s13
      %s16 = sshll.u32 [#allocation2], 4
      %s17 = int_to_ptr.vmem [resolvable:$true] %s16
      %19 = dma.hbm_to_vmem [thread:$0]  %s0, 368, %s17, [#allocation3]
    $region5: #{tpu_custom_call.1} parent=1 // pred_fallthru
      _
    // Predicated region
    $region6: #{tpu_custom_call.1} parent=1 // pred_check
      _
    $region7: #{tpu_custom_call.1} parent=1 // pred_check_branch
      %21 = sbr.rel (0) target = $region9
    $region8: #{tpu_custom_call.1} parent=1 // pred_region
      %s23 = ssub.s32 368, 368
      %24 = vsyncadd [#allocation6], %s23
      %s26 = sshll.u32 [#allocation5], 4
      %s27 = int_to_ptr.vmem [resolvable:$true] %s26
      %29 = dma.hbm_to_vmem [thread:$0]  %s1, 368, %s27, [#allocation6]
    $region9: #{tpu_custom_call.1} parent=1 // pred_fallthru
      _
    // Predicated region
    $region10: #{tpu_custom_call.1} parent=1 // pred_check
      _
    $region11: #{tpu_custom_call.1} parent=1 // pred_check_branch
      %31 = sbr.rel (0) target = $region13
    $region12: #{tpu_custom_call.1} parent=1 // pred_region
      %32 = dma.done [#allocation3], 368
    $region13: #{tpu_custom_call.1} parent=1 // pred_fallthru
      _
    // Predicated region
    $region14: #{tpu_custom_call.1} parent=1 // pred_check
      _
    $region15: #{tpu_custom_call.1} parent=1 // pred_check_branch
      %34 = sbr.rel (0) target = $region17
    $region16: #{tpu_custom_call.1} parent=1 // pred_region
      %35 = dma.done [#allocation6], 368
    $region17: #{tpu_custom_call.1} parent=1 // pred_fallthru
      _
    %v36 = vlaneseq
    %v37 = vshrl.u32 %v36, 7
    %v38 = vadd.s32 %v37, 8
    %v39 = vadd.s32 %v37, 16
    %v40 = vadd.s32 %v37, 24
    %s41 = smul.u32 0, 32
    %v42 = vstv %s41
    %v43 = vadd.s32 %v37, %v42
    %v44 = vadd.s32 %v38, %v42
    %v45 = vadd.s32 %v39, %v42
    %v46 = vadd.s32 %v40, %v42
    %v47 = vcvt.s32.f32 %v43
    %v48 = vcvt.s32.f32 %v44
    %v49 = vcvt.s32.f32 %v45
    %v50 = vcvt.s32.f32 %v46
    %v51 = vadd.f32 %v47, 0.5
    %v52 = vadd.f32 %v48, 0.5
    %v53 = vadd.f32 %v49, 0.5
    %v54 = vadd.f32 %v50, 0.5
    %v55 = vmul.f32 %v51, 4.0
    %v56 = vmul.f32 %v52, 4.0
    %v57 = vmul.f32 %v53, 4.0
    %v58 = vmul.f32 %v54, 4.0
    %v59 = vld [vmem:[#allocation2] sm:$0xff]
    %v60 = vld [vmem:[#allocation2 + $0x8] sm:$0xff]
    %v61 = vld [vmem:[#allocation2 + $0x10] sm:$0x7f]
    %v62 = vld [vmem:[#allocation5] sm:$0xff]
    %v63 = vld [vmem:[#allocation5 + $0x8] sm:$0xff]
    %v64 = vld [vmem:[#allocation5 + $0x10] sm:$0x7f]
    %v68 = vlaneseq
    %v69 = vshrl.u32 %v68, 7
    %v70 = vsub.s32 0, %v69
    %v71 = vrot.slane %v62, %v70
    %v72 = vlaneseq
    %v73 = vshrl.u32 %v72, 7
    %v74 = vsub.s32 1, %v73
    %v75 = vrot.slane %v62, %v74
    %v76 = vlaneseq
    %v77 = vshrl.u32 %v76, 7
    %v78 = vsub.s32 2, %v77
    %v79 = vrot.slane %v62, %v78
    %v80 = vlaneseq
    %v81 = vshrl.u32 %v80, 7
    %v82 = vsub.s32 3, %v81
    %v83 = vrot.slane %v62, %v82
    %v84 = vlaneseq
    %v85 = vshrl.u32 %v84, 7
    %v86 = vsub.s32 4, %v85
    %v87 = vrot.slane %v62, %v86
    %v88 = vlaneseq
    %v89 = vshrl.u32 %v88, 7
    %v90 = vsub.s32 5, %v89
    %v91 = vrot.slane %v62, %v90
    %v92 = vlaneseq
    %v93 = vshrl.u32 %v92, 7
    %v94 = vsub.s32 6, %v93
    %v95 = vrot.slane %v62, %v94
    %v96 = vlaneseq
    %v97 = vshrl.u32 %v96, 7
    %v98 = vsub.s32 7, %v97
    %v99 = vrot.slane %v62, %v98
    %v100 = vlaneseq
    %v101 = vshrl.u32 %v100, 7
    %v102 = vsub.s32 0, %v101
    %v103 = vrot.slane %v63, %v102
    %v104 = vlaneseq
    %v105 = vshrl.u32 %v104, 7
    %v106 = vsub.s32 1, %v105
    %v107 = vrot.slane %v63, %v106
    %v108 = vlaneseq
    %v109 = vshrl.u32 %v108, 7
    %v110 = vsub.s32 2, %v109
    %v111 = vrot.slane %v63, %v110
    %v112 = vlaneseq
    %v113 = vshrl.u32 %v112, 7
    %v114 = vsub.s32 3, %v113
    %v115 = vrot.slane %v63, %v114
    %v116 = vlaneseq
    %v117 = vshrl.u32 %v116, 7
    %v118 = vsub.s32 4, %v117
    %v119 = vrot.slane %v63, %v118
    %v120 = vlaneseq
    %v121 = vshrl.u32 %v120, 7
    %v122 = vsub.s32 5, %v121
    %v123 = vrot.slane %v63, %v122
    %v124 = vlaneseq
    %v125 = vshrl.u32 %v124, 7
    %v126 = vsub.s32 6, %v125
    %v127 = vrot.slane %v63, %v126
    %v128 = vlaneseq
    %v129 = vshrl.u32 %v128, 7
    %v130 = vsub.s32 7, %v129
    %v131 = vrot.slane %v63, %v130
    %v132 = vlaneseq
    %v133 = vshrl.u32 %v132, 7
    %v134 = vsub.s32 0, %v133
    %v135 = vrot.slane %v64, %v134
    %v136 = vlaneseq
    %v137 = vshrl.u32 %v136, 7
    %v138 = vsub.s32 1, %v137
    %v139 = vrot.slane %v64, %v138
    %v140 = vlaneseq
    %v141 = vshrl.u32 %v140, 7
    %v142 = vsub.s32 2, %v141
    %v143 = vrot.slane %v64, %v142
    %v144 = vlaneseq
    %v145 = vshrl.u32 %v144, 7
    %v146 = vsub.s32 3, %v145
    %v147 = vrot.slane %v64, %v146
    %v148 = vlaneseq
    %v149 = vshrl.u32 %v148, 7
    %v150 = vsub.s32 4, %v149
    %v151 = vrot.slane %v64, %v150
    %v152 = vlaneseq
    %v153 = vshrl.u32 %v152, 7
    %v154 = vsub.s32 5, %v153
    %v155 = vrot.slane %v64, %v154
    %v156 = vlaneseq
    %v157 = vshrl.u32 %v156, 7
    %v158 = vsub.s32 6, %v157
    %v159 = vrot.slane %v64, %v158
    %v183 = vmul.f32 %v71, %v55
    %v184 = vmul.f32 %v75, %v55
    %v185 = vmul.f32 %v79, %v55
    %v186 = vmul.f32 %v83, %v55
    %v187 = vmul.f32 %v87, %v55
    %v188 = vmul.f32 %v91, %v55
    %v189 = vmul.f32 %v95, %v55
    %v190 = vmul.f32 %v99, %v55
    %v191 = vmul.f32 %v103, %v55
    %v192 = vmul.f32 %v107, %v55
    %v193 = vmul.f32 %v111, %v55
    %v194 = vmul.f32 %v115, %v55
    %v195 = vmul.f32 %v119, %v55
    %v196 = vmul.f32 %v123, %v55
    %v197 = vmul.f32 %v127, %v55
    %v198 = vmul.f32 %v131, %v55
    %v199 = vmul.f32 %v135, %v55
    %v200 = vmul.f32 %v139, %v55
    %v201 = vmul.f32 %v143, %v55
    %v202 = vmul.f32 %v147, %v55
    %v203 = vmul.f32 %v151, %v55
    %v204 = vmul.f32 %v155, %v55
    %v205 = vmul.f32 %v159, %v55
    %v206 = vmul.f32 %v71, %v56
    %v207 = vmul.f32 %v75, %v56
    %v208 = vmul.f32 %v79, %v56
    %v209 = vmul.f32 %v83, %v56
    %v210 = vmul.f32 %v87, %v56
    %v211 = vmul.f32 %v91, %v56
    %v212 = vmul.f32 %v95, %v56
    %v213 = vmul.f32 %v99, %v56
    %v214 = vmul.f32 %v103, %v56
    %v215 = vmul.f32 %v107, %v56
    %v216 = vmul.f32 %v111, %v56
    %v217 = vmul.f32 %v115, %v56
    %v218 = vmul.f32 %v119, %v56
    %v219 = vmul.f32 %v123, %v56
    %v220 = vmul.f32 %v127, %v56
    %v221 = vmul.f32 %v131, %v56
    %v222 = vmul.f32 %v135, %v56
    %v223 = vmul.f32 %v139, %v56
    %v224 = vmul.f32 %v143, %v56
    %v225 = vmul.f32 %v147, %v56
    %v226 = vmul.f32 %v151, %v56
    %v227 = vmul.f32 %v155, %v56
    %v228 = vmul.f32 %v159, %v56
    %v229 = vmul.f32 %v71, %v57
    %v230 = vmul.f32 %v75, %v57
    %v231 = vmul.f32 %v79, %v57
    %v232 = vmul.f32 %v83, %v57
    %v233 = vmul.f32 %v87, %v57
    %v234 = vmul.f32 %v91, %v57
    %v235 = vmul.f32 %v95, %v57
    %v236 = vmul.f32 %v99, %v57
    %v237 = vmul.f32 %v103, %v57
    %v238 = vmul.f32 %v107, %v57
    %v239 = vmul.f32 %v111, %v57
    %v240 = vmul.f32 %v115, %v57
    %v241 = vmul.f32 %v119, %v57
    %v242 = vmul.f32 %v123, %v57
    %v243 = vmul.f32 %v127, %v57
    %v244 = vmul.f32 %v131, %v57
    %v245 = vmul.f32 %v135, %v57
    %v246 = vmul.f32 %v139, %v57
    %v247 = vmul.f32 %v143, %v57
    %v248 = vmul.f32 %v147, %v57
    %v249 = vmul.f32 %v151, %v57
    %v250 = vmul.f32 %v155, %v57
    %v251 = vmul.f32 %v159, %v57
    %v252 = vmul.f32 %v71, %v58
    %v253 = vmul.f32 %v75, %v58
    %v254 = vmul.f32 %v79, %v58
    %v255 = vmul.f32 %v83, %v58
    %v256 = vmul.f32 %v87, %v58
    %v257 = vmul.f32 %v91, %v58
    %v258 = vmul.f32 %v95, %v58
    %v259 = vmul.f32 %v99, %v58
    %v260 = vmul.f32 %v103, %v58
    %v261 = vmul.f32 %v107, %v58
    %v262 = vmul.f32 %v111, %v58
    %v263 = vmul.f32 %v115, %v58
    %v264 = vmul.f32 %v119, %v58
    %v265 = vmul.f32 %v123, %v58
    %v266 = vmul.f32 %v127, %v58
    %v267 = vmul.f32 %v131, %v58
    %v268 = vmul.f32 %v135, %v58
    %v269 = vmul.f32 %v139, %v58
    %v270 = vmul.f32 %v143, %v58
    %v271 = vmul.f32 %v147, %v58
    %v272 = vmul.f32 %v151, %v58
    %v273 = vmul.f32 %v155, %v58
    %v274 = vmul.f32 %v159, %v58
    %v278 = vlaneseq
    %v279 = vshrl.u32 %v278, 7
    %v280 = vsub.s32 0, %v279
    %v281 = vrot.slane %v59, %v280
    %v282 = vlaneseq
    %v283 = vshrl.u32 %v282, 7
    %v284 = vsub.s32 1, %v283
    %v285 = vrot.slane %v59, %v284
    %v286 = vlaneseq
    %v287 = vshrl.u32 %v286, 7
    %v288 = vsub.s32 2, %v287
    %v289 = vrot.slane %v59, %v288
    %v290 = vlaneseq
    %v291 = vshrl.u32 %v290, 7
    %v292 = vsub.s32 3, %v291
    %v293 = vrot.slane %v59, %v292
    %v294 = vlaneseq
    %v295 = vshrl.u32 %v294, 7
    %v296 = vsub.s32 4, %v295
    %v297 = vrot.slane %v59, %v296
    %v298 = vlaneseq
    %v299 = vshrl.u32 %v298, 7
    %v300 = vsub.s32 5, %v299
    %v301 = vrot.slane %v59, %v300
    %v302 = vlaneseq
    %v303 = vshrl.u32 %v302, 7
    %v304 = vsub.s32 6, %v303
    %v305 = vrot.slane %v59, %v304
    %v306 = vlaneseq
    %v307 = vshrl.u32 %v306, 7
    %v308 = vsub.s32 7, %v307
    %v309 = vrot.slane %v59, %v308
    %v310 = vlaneseq
    %v311 = vshrl.u32 %v310, 7
    %v312 = vsub.s32 0, %v311
    %v313 = vrot.slane %v60, %v312
    %v314 = vlaneseq
    %v315 = vshrl.u32 %v314, 7
    %v316 = vsub.s32 1, %v315
    %v317 = vrot.slane %v60, %v316
    %v318 = vlaneseq
    %v319 = vshrl.u32 %v318, 7
    %v320 = vsub.s32 2, %v319
    %v321 = vrot.slane %v60, %v320
    %v322 = vlaneseq
    %v323 = vshrl.u32 %v322, 7
    %v324 = vsub.s32 3, %v323
    %v325 = vrot.slane %v60, %v324
    %v326 = vlaneseq
    %v327 = vshrl.u32 %v326, 7
    %v328 = vsub.s32 4, %v327
    %v329 = vrot.slane %v60, %v328
    %v330 = vlaneseq
    %v331 = vshrl.u32 %v330, 7
    %v332 = vsub.s32 5, %v331
    %v333 = vrot.slane %v60, %v332
    %v334 = vlaneseq
    %v335 = vshrl.u32 %v334, 7
    %v336 = vsub.s32 6, %v335
    %v337 = vrot.slane %v60, %v336
    %v338 = vlaneseq
    %v339 = vshrl.u32 %v338, 7
    %v340 = vsub.s32 7, %v339
    %v341 = vrot.slane %v60, %v340
    %v342 = vlaneseq
    %v343 = vshrl.u32 %v342, 7
    %v344 = vsub.s32 0, %v343
    %v345 = vrot.slane %v61, %v344
    %v346 = vlaneseq
    %v347 = vshrl.u32 %v346, 7
    %v348 = vsub.s32 1, %v347
    %v349 = vrot.slane %v61, %v348
    %v350 = vlaneseq
    %v351 = vshrl.u32 %v350, 7
    %v352 = vsub.s32 2, %v351
    %v353 = vrot.slane %v61, %v352
    %v354 = vlaneseq
    %v355 = vshrl.u32 %v354, 7
    %v356 = vsub.s32 3, %v355
    %v357 = vrot.slane %v61, %v356
    %v358 = vlaneseq
    %v359 = vshrl.u32 %v358, 7
    %v360 = vsub.s32 4, %v359
    %v361 = vrot.slane %v61, %v360
    %v362 = vlaneseq
    %v363 = vshrl.u32 %v362, 7
    %v364 = vsub.s32 5, %v363
    %v365 = vrot.slane %v61, %v364
    %v366 = vlaneseq
    %v367 = vshrl.u32 %v366, 7
    %v368 = vsub.s32 6, %v367
    %v369 = vrot.slane %v61, %v368
    %v393 = vadd.f32 %v281, %v183
    %v394 = vadd.f32 %v285, %v184
    %v395 = vadd.f32 %v289, %v185
    %v396 = vadd.f32 %v293, %v186
    %v397 = vadd.f32 %v297, %v187
    %v398 = vadd.f32 %v301, %v188
    %v399 = vadd.f32 %v305, %v189
    %v400 = vadd.f32 %v309, %v190
    %v401 = vadd.f32 %v313, %v191
    %v402 = vadd.f32 %v317, %v192
    %v403 = vadd.f32 %v321, %v193
    %v404 = vadd.f32 %v325, %v194
    %v405 = vadd.f32 %v329, %v195
    %v406 = vadd.f32 %v333, %v196
    %v407 = vadd.f32 %v337, %v197
    %v408 = vadd.f32 %v341, %v198
    %v409 = vadd.f32 %v345, %v199
    %v410 = vadd.f32 %v349, %v200
    %v411 = vadd.f32 %v353, %v201
    %v412 = vadd.f32 %v357, %v202
    %v413 = vadd.f32 %v361, %v203
    %v414 = vadd.f32 %v365, %v204
    %v415 = vadd.f32 %v369, %v205
    %v416 = vadd.f32 %v281, %v206
    %v417 = vadd.f32 %v285, %v207
    %v418 = vadd.f32 %v289, %v208
    %v419 = vadd.f32 %v293, %v209
    %v420 = vadd.f32 %v297, %v210
    %v421 = vadd.f32 %v301, %v211
    %v422 = vadd.f32 %v305, %v212
    %v423 = vadd.f32 %v309, %v213
    %v424 = vadd.f32 %v313, %v214
    %v425 = vadd.f32 %v317, %v215
    %v426 = vadd.f32 %v321, %v216
    %v427 = vadd.f32 %v325, %v217
    %v428 = vadd.f32 %v329, %v218
    %v429 = vadd.f32 %v333, %v219
    %v430 = vadd.f32 %v337, %v220
    %v431 = vadd.f32 %v341, %v221
    %v432 = vadd.f32 %v345, %v222
    %v433 = vadd.f32 %v349, %v223
    %v434 = vadd.f32 %v353, %v224
    %v435 = vadd.f32 %v357, %v225
    %v436 = vadd.f32 %v361, %v226
    %v437 = vadd.f32 %v365, %v227
    %v438 = vadd.f32 %v369, %v228
    %v439 = vadd.f32 %v281, %v229
    %v440 = vadd.f32 %v285, %v230
    %v441 = vadd.f32 %v289, %v231
    %v442 = vadd.f32 %v293, %v232
    %v443 = vadd.f32 %v297, %v233
    %v444 = vadd.f32 %v301, %v234
    %v445 = vadd.f32 %v305, %v235
    %v446 = vadd.f32 %v309, %v236
    %v447 = vadd.f32 %v313, %v237
    %v448 = vadd.f32 %v317, %v238
    %v449 = vadd.f32 %v321, %v239
    %v450 = vadd.f32 %v325, %v240
    %v451 = vadd.f32 %v329, %v241
    %v452 = vadd.f32 %v333, %v242
    %v453 = vadd.f32 %v337, %v243
    %v454 = vadd.f32 %v341, %v244
    %v455 = vadd.f32 %v345, %v245
    %v456 = vadd.f32 %v349, %v246
    %v457 = vadd.f32 %v353, %v247
    %v458 = vadd.f32 %v357, %v248
    %v459 = vadd.f32 %v361, %v249
    %v460 = vadd.f32 %v365, %v250
    %v461 = vadd.f32 %v369, %v251
    %v462 = vadd.f32 %v281, %v252
    %v463 = vadd.f32 %v285, %v253
    %v464 = vadd.f32 %v289, %v254
    %v465 = vadd.f32 %v293, %v255
    %v466 = vadd.f32 %v297, %v256
    %v467 = vadd.f32 %v301, %v257
    %v468 = vadd.f32 %v305, %v258
    %v469 = vadd.f32 %v309, %v259
    %v470 = vadd.f32 %v313, %v260
    %v471 = vadd.f32 %v317, %v261
    %v472 = vadd.f32 %v321, %v262
    %v473 = vadd.f32 %v325, %v263
    %v474 = vadd.f32 %v329, %v264
    %v475 = vadd.f32 %v333, %v265
    %v476 = vadd.f32 %v337, %v266
    %v477 = vadd.f32 %v341, %v267
    %v478 = vadd.f32 %v345, %v268
    %v479 = vadd.f32 %v349, %v269
    %v480 = vadd.f32 %v353, %v270
    %v481 = vadd.f32 %v357, %v271
    %v482 = vadd.f32 %v361, %v272
    %v483 = vadd.f32 %v365, %v273
    %v484 = vadd.f32 %v369, %v274
    %485 = vst [vmem:[#allocation7] sm:$0xff] %v393
    %486 = vst [vmem:[#allocation7 + $0x8] sm:$0xff] %v394
    %487 = vst [vmem:[#allocation7 + $0x10] sm:$0xff] %v395
    %488 = vst [vmem:[#allocation7 + $0x18] sm:$0xff] %v396
    %489 = vst [vmem:[#allocation7 + $0x20] sm:$0xff] %v397
    %490 = vst [vmem:[#allocation7 + $0x28] sm:$0xff] %v398
    %491 = vst [vmem:[#allocation7 + $0x30] sm:$0xff] %v399
    %492 = vst [vmem:[#allocation7 + $0x38] sm:$0xff] %v400
    %493 = vst [vmem:[#allocation7 + $0x40] sm:$0xff] %v401
    %494 = vst [vmem:[#allocation7 + $0x48] sm:$0xff] %v402
    %495 = vst [vmem:[#allocation7 + $0x50] sm:$0xff] %v403
    %496 = vst [vmem:[#allocation7 + $0x58] sm:$0xff] %v404
    %497 = vst [vmem:[#allocation7 + $0x60] sm:$0xff] %v405
    %498 = vst [vmem:[#allocation7 + $0x68] sm:$0xff] %v406
    %499 = vst [vmem:[#allocation7 + $0x70] sm:$0xff] %v407
    %500 = vst [vmem:[#allocation7 + $0x78] sm:$0xff] %v408
    %501 = vst [vmem:[#allocation7 + $0x80] sm:$0xff] %v409
    %502 = vst [vmem:[#allocation7 + $0x88] sm:$0xff] %v410
    %503 = vst [vmem:[#allocation7 + $0x90] sm:$0xff] %v411
    %504 = vst [vmem:[#allocation7 + $0x98] sm:$0xff] %v412
    %505 = vst [vmem:[#allocation7 + $0xa0] sm:$0xff] %v413
    %506 = vst [vmem:[#allocation7 + $0xa8] sm:$0xff] %v414
    %vm507 = vcmask 523264
    %508 = vst.msk [vmem:[#allocation7 + $0xb0] sm:$0xff] %vm507, %v415
    %509 = vst [vmem:[#allocation7 + $0xb8] sm:$0xff] %v416
    %510 = vst [vmem:[#allocation7 + $0xc0] sm:$0xff] %v417
    %511 = vst [vmem:[#allocation7 + $0xc8] sm:$0xff] %v418
    %512 = vst [vmem:[#allocation7 + $0xd0] sm:$0xff] %v419
    %513 = vst [vmem:[#allocation7 + $0xd8] sm:$0xff] %v420
    %514 = vst [vmem:[#allocation7 + $0xe0] sm:$0xff] %v421
    %515 = vst [vmem:[#allocation7 + $0xe8] sm:$0xff] %v422
    %516 = vst [vmem:[#allocation7 + $0xf0] sm:$0xff] %v423
    %517 = vst [vmem:[#allocation7 + $0xf8] sm:$0xff] %v424
    %518 = vst [vmem:[#allocation7 + $0x100] sm:$0xff] %v425
    %519 = vst [vmem:[#allocation7 + $0x108] sm:$0xff] %v426
    %520 = vst [vmem:[#allocation7 + $0x110] sm:$0xff] %v427
    %521 = vst [vmem:[#allocation7 + $0x118] sm:$0xff] %v428
    %522 = vst [vmem:[#allocation7 + $0x120] sm:$0xff] %v429
    %523 = vst [vmem:[#allocation7 + $0x128] sm:$0xff] %v430
    %524 = vst [vmem:[#allocation7 + $0x130] sm:$0xff] %v431
    %525 = vst [vmem:[#allocation7 + $0x138] sm:$0xff] %v432
    %526 = vst [vmem:[#allocation7 + $0x140] sm:$0xff] %v433
    %527 = vst [vmem:[#allocation7 + $0x148] sm:$0xff] %v434
    %528 = vst [vmem:[#allocation7 + $0x150] sm:$0xff] %v435
    %529 = vst [vmem:[#allocation7 + $0x158] sm:$0xff] %v436
    %530 = vst [vmem:[#allocation7 + $0x160] sm:$0xff] %v437
    %531 = vst.msk [vmem:[#allocation7 + $0x168] sm:$0xff] %vm507, %v438
    %532 = vst [vmem:[#allocation7 + $0x170] sm:$0xff] %v439
    %533 = vst [vmem:[#allocation7 + $0x178] sm:$0xff] %v440
    %534 = vst [vmem:[#allocation7 + $0x180] sm:$0xff] %v441
    %535 = vst [vmem:[#allocation7 + $0x188] sm:$0xff] %v442
    %536 = vst [vmem:[#allocation7 + $0x190] sm:$0xff] %v443
    %537 = vst [vmem:[#allocation7 + $0x198] sm:$0xff] %v444
    %538 = vst [vmem:[#allocation7 + $0x1a0] sm:$0xff] %v445
    %539 = vst [vmem:[#allocation7 + $0x1a8] sm:$0xff] %v446
    %540 = vst [vmem:[#allocation7 + $0x1b0] sm:$0xff] %v447
    %541 = vst [vmem:[#allocation7 + $0x1b8] sm:$0xff] %v448
    %542 = vst [vmem:[#allocation7 + $0x1c0] sm:$0xff] %v449
    %543 = vst [vmem:[#allocation7 + $0x1c8] sm:$0xff] %v450
    %544 = vst [vmem:[#allocation7 + $0x1d0] sm:$0xff] %v451
    %545 = vst [vmem:[#allocation7 + $0x1d8] sm:$0xff] %v452
    %546 = vst [vmem:[#allocation7 + $0x1e0] sm:$0xff] %v453
    %547 = vst [vmem:[#allocation7 + $0x1e8] sm:$0xff] %v454
    %548 = vst [vmem:[#allocation7 + $0x1f0] sm:$0xff] %v455
    %549 = vst [vmem:[#allocation7 + $0x1f8] sm:$0xff] %v456
    %550 = vst [vmem:[#allocation7 + $0x200] sm:$0xff] %v457
    %551 = vst [vmem:[#allocation7 + $0x208] sm:$0xff] %v458
    %552 = vst [vmem:[#allocation7 + $0x210] sm:$0xff] %v459
    %553 = vst [vmem:[#allocation7 + $0x218] sm:$0xff] %v460
    %554 = vst.msk [vmem:[#allocation7 + $0x220] sm:$0xff] %vm507, %v461
    %555 = vst [vmem:[#allocation7 + $0x228] sm:$0xff] %v462
    %556 = vst [vmem:[#allocation7 + $0x230] sm:$0xff] %v463
    %557 = vst [vmem:[#allocation7 + $0x238] sm:$0xff] %v464
    %558 = vst [vmem:[#allocation7 + $0x240] sm:$0xff] %v465
    %559 = vst [vmem:[#allocation7 + $0x248] sm:$0xff] %v466
    %560 = vst [vmem:[#allocation7 + $0x250] sm:$0xff] %v467
    %561 = vst [vmem:[#allocation7 + $0x258] sm:$0xff] %v468
    %562 = vst [vmem:[#allocation7 + $0x260] sm:$0xff] %v469
    %563 = vst [vmem:[#allocation7 + $0x268] sm:$0xff] %v470
    %564 = vst [vmem:[#allocation7 + $0x270] sm:$0xff] %v471
    %565 = vst [vmem:[#allocation7 + $0x278] sm:$0xff] %v472
    %566 = vst [vmem:[#allocation7 + $0x280] sm:$0xff] %v473
    %567 = vst [vmem:[#allocation7 + $0x288] sm:$0xff] %v474
    %568 = vst [vmem:[#allocation7 + $0x290] sm:$0xff] %v475
    %569 = vst [vmem:[#allocation7 + $0x298] sm:$0xff] %v476
    %570 = vst [vmem:[#allocation7 + $0x2a0] sm:$0xff] %v477
    %571 = vst [vmem:[#allocation7 + $0x2a8] sm:$0xff] %v478
    %572 = vst [vmem:[#allocation7 + $0x2b0] sm:$0xff] %v479
    %573 = vst [vmem:[#allocation7 + $0x2b8] sm:$0xff] %v480
    %574 = vst [vmem:[#allocation7 + $0x2c0] sm:$0xff] %v481
    %575 = vst [vmem:[#allocation7 + $0x2c8] sm:$0xff] %v482
    %576 = vst [vmem:[#allocation7 + $0x2d0] sm:$0xff] %v483
    %577 = vst.msk [vmem:[#allocation7 + $0x2d8] sm:$0xff] %vm507, %v484
    // Predicated region
    $region18: #{tpu_custom_call.1} parent=1 // pred_check
      _
    $region19: #{tpu_custom_call.1} parent=1 // pred_check_branch
      %579 = sbr.rel (0) target = $region21
    $region20: #{tpu_custom_call.1} parent=1 // pred_region
      %s581 = ssub.s32 11776, 11776
      %582 = vsyncadd [#allocation4], %s581
      %s583 = sshll.u32 [#allocation7], 4
      %s584 = int_to_ptr.vmem [resolvable:$true] %s583
      %589 = dma.vmem_to_hbm [thread:$0]  %s584, 11776, %s2, [#allocation4], 2944, 2944, 184
    $region21: #{tpu_custom_call.1} parent=1 // pred_fallthru
      _
    // Predicated region
    $region22: #{tpu_custom_call.1} parent=1 // pred_check
      _
    $region23: #{tpu_custom_call.1} parent=1 // pred_check_branch
      %591 = sbr.rel (0) target = $region25
    $region24: #{tpu_custom_call.1} parent=1 // pred_region
      %592 = dma.done [#allocation4], 11776
    $region25: #{tpu_custom_call.1} parent=1 // pred_fallthru
      _
    %593 = vsyncpa [#allocation3], 1
    %594 = vsyncpa [#allocation6], 1
    %595 = vsyncpa [#allocation4], 1

</llo_original>
